<compile_context>
chip_gen: v6e
topology: v6e:2x2x1
jax: 0.10.0
libtpu: 0.0.40
codegen_flags: <defaults>
</compile_context>

<pallas_src>
import math

import jax
import jax.numpy as jnp
from jax.experimental import pallas as pl
from jax.experimental.pallas import tpu as pltpu

L = 16                    # sequence length / flattened feature size for fc1
H1 = 8                    # fc1 output width
NUM_CLASSES = 2           # fc2 output width
PACK = 8                  # samples packed per 128-lane row
PACKED_W = PACK * L       # 128 lanes per packed input row
OUT_W = PACK * NUM_CLASSES  # 16 lanes per packed output row
MAX_ROW_TILE = 2048       # packed rows per grid step (= 16384 samples, ~1 MiB/tile)


def cnn_kernel(c1b_ref, c2b_ref,                 # SMEM scalars (conv biases)
               x_ref, m1_ref, m2_ref, wf_ref, bf_ref,  # VMEM tensors
               out_ref):
    x = x_ref[...]                                           # (row_tile, 128)
    # Conv1 + ReLU  (block-diagonal band matmul, K=128)
    h = jnp.dot(x, m1_ref[...], preferred_element_type=jnp.float32)
    h = jnp.maximum(h + c1b_ref[0], 0.0)
    # Conv2 + ReLU
    h = jnp.dot(h, m2_ref[...], preferred_element_type=jnp.float32)
    h = jnp.maximum(h + c2b_ref[0], 0.0)
    # Flatten is a no-op (C=1); fc1+fc2 fused into one (128, 16) block-diag matmul
    out_ref[...] = (jnp.dot(h, wf_ref[...], preferred_element_type=jnp.float32)
                    + bf_ref[...])


def _band_matrix(w):
    """16x16 matrix M s.t. (x @ M)[l] = w0*x[l-1] + w1*x[l] + w2*x[l+1] (zero pad)."""
    idx = jnp.arange(L)
    row = idx[:, None]    # source index j
    col = idx[None, :]    # output index l
    m = jnp.where(row == col - 1, w[0], jnp.float32(0.0))
    m = jnp.where(row == col,     w[1], m)
    m = jnp.where(row == col + 1, w[2], m)
    return m.astype(jnp.float32)


def cnn_forward(x, params):
    """x: (B, 1, L) float32 (NCL, like PyTorch). Returns (B, NUM_CLASSES)."""
    B = x.shape[0]
    x2d = x.reshape(B, L).astype(jnp.float32)

    # --- pack 8 samples per 128-lane row, pad batch to a whole number of tiles ---
    rows = -(-B // PACK)
    row_tile = min(MAX_ROW_TILE, ((rows + 7) // 8) * 8)
    rows_pad = row_tile * (-(-rows // row_tile))
    b_pad = rows_pad * PACK
    xp = jnp.pad(x2d, ((0, b_pad - B), (0, 0)))
    x_packed = xp.reshape(rows_pad, PACKED_W)

    # --- precompute resident weights (done once in the wrapper, not per step) ---
    eye8 = jnp.eye(PACK, dtype=jnp.float32)
    m1 = jnp.kron(eye8, _band_matrix(params["c1w"]))             # (128, 128)
    m2 = jnp.kron(eye8, _band_matrix(params["c2w"]))             # (128, 128)
    w1_t = params["w1"].T                                        # (16, 8)
    w2_t = params["w2"].T                                        # (8, 2)
    w_comb = (w1_t @ w2_t).astype(jnp.float32)                   # (16, 2)  fc1∘fc2
    b_comb = (params["b1"] @ w2_t + params["b2"]).astype(jnp.float32)  # (2,)
    wf = jnp.kron(eye8, w_comb)                                  # (128, 16)
    bf = jnp.tile(b_comb, (PACK,)).reshape(1, OUT_W)             # (1, 16)

    grid = (rows_pad // row_tile,)

    flops = int(2 * (2 * rows_pad * PACKED_W * PACKED_W)         # two conv matmuls
                + 2 * rows_pad * PACKED_W * OUT_W)               # fused fc matmul
    bytes_accessed = int(4 * (rows_pad * PACKED_W                # x in
                              + rows_pad * OUT_W                 # out
                              + 2 * PACKED_W * PACKED_W          # conv matrices
                              + PACKED_W * OUT_W + OUT_W + 2))   # fc weight/bias

    smem_spec = pl.BlockSpec(memory_space=pltpu.MemorySpace.SMEM)

    out_packed = pl.pallas_call(
        cnn_kernel,
        out_shape=jax.ShapeDtypeStruct((rows_pad, OUT_W), jnp.float32),
        grid=grid,
        in_specs=[
            smem_spec,                                               # c1b
            smem_spec,                                               # c2b
            pl.BlockSpec((row_tile, PACKED_W), lambda i: (i, 0)),    # x (tiled)
            pl.BlockSpec((PACKED_W, PACKED_W), lambda i: (0, 0)),    # m1 (resident)
            pl.BlockSpec((PACKED_W, PACKED_W), lambda i: (0, 0)),    # m2 (resident)
            pl.BlockSpec((PACKED_W, OUT_W),    lambda i: (0, 0)),    # wf (resident)
            pl.BlockSpec((1, OUT_W),           lambda i: (0, 0)),    # bf (resident)
        ],
        out_specs=pl.BlockSpec((row_tile, OUT_W), lambda i: (i, 0)),
        compiler_params=pltpu.CompilerParams(
            dimension_semantics=("parallel",)),
        cost_estimate=pl.CostEstimate(flops=flops, transcendentals=0,
                                      bytes_accessed=bytes_accessed),
    )(params["c1b"], params["c2b"], x_packed, m1, m2, wf, bf)

    return out_packed.reshape(b_pad, NUM_CLASSES)[:B]


def cnn_forward_ref(x, params):
    """Pure-JAX reference mirroring the PyTorch module semantics."""
    B = x.shape[0]
    h = x.reshape(B, L)

    def conv1d(v, w, b):
        vp = jnp.pad(v, ((0, 0), (1, 1)))
        return w[0] * vp[:, :-2] + w[1] * vp[:, 1:-1] + w[2] * vp[:, 2:] + b[0]

    h = jnp.maximum(conv1d(h, params["c1w"], params["c1b"]), 0.0)
    h = jnp.maximum(conv1d(h, params["c2w"], params["c2b"]), 0.0)
    h = h @ params["w1"].T + params["b1"]   # fc1 (no ReLU after, per the module)
    h = h @ params["w2"].T + params["b2"]   # fc2
    return h


def init_params(key):
    """Deterministic synthetic parameters matching the PyTorch module's shapes."""
    ks = jax.random.split(key, 8)
    return {
        # Conv1d(1, 1, 3): weight (1,1,3) -> (3,), bias (1,)
        "c1w": jax.random.normal(ks[0], (3,), jnp.float32) * 0.5,
        "c1b": jax.random.normal(ks[1], (1,), jnp.float32) * 0.1,
        "c2w": jax.random.normal(ks[2], (3,), jnp.float32) * 0.5,
        "c2b": jax.random.normal(ks[3], (1,), jnp.float32) * 0.1,
        # Linear(16, 8): weight (8,16), bias (8,)
        "w1": jax.random.normal(ks[4], (H1, L), jnp.float32) * 0.25,
        "b1": jax.random.normal(ks[5], (H1,), jnp.float32) * 0.1,
        # Linear(8, 2): weight (2,8), bias (2,)
        "w2": jax.random.normal(ks[6], (NUM_CLASSES, H1), jnp.float32) * 0.25,
        "b2": jax.random.normal(ks[7], (NUM_CLASSES,), jnp.float32) * 0.1,
    }


if __name__ == "__main__":
    key = jax.random.PRNGKey(0)
    pkey, xkey = jax.random.split(key)
    params = init_params(pkey)

    B = 2
    x = jax.random.normal(xkey, (B, 1, L), jnp.float32)  # (N, C=1, L=16)

    out = cnn_forward(x, params)
    out = jax.block_until_ready(out)

    ref = cnn_forward_ref(x, params)
    assert out.shape == (B, NUM_CLASSES)
    assert jnp.allclose(out, ref, atol=1e-4, rtol=1e-4), (out, ref)

    print("KERNEL_OK")
</pallas_src>

<mosaic_0001>
module attributes {stable_mosaic.version = 11 : i64} {
  func.func @cnn_kernel(%arg0: i32, %arg1: memref<1xf32, #tpu.memory_space<smem>>, %arg2: memref<1xf32, #tpu.memory_space<smem>>, %arg3: memref<8x128xf32, #tpu.memory_space<vmem>>, %arg4: memref<128x128xf32, #tpu.memory_space<vmem>>, %arg5: memref<128x128xf32, #tpu.memory_space<vmem>>, %arg6: memref<128x16xf32, #tpu.memory_space<vmem>>, %arg7: memref<1x16xf32, #tpu.memory_space<vmem>>, %arg8: memref<8x16xf32, #tpu.memory_space<vmem>>) attributes {dimension_semantics = [#tpu.dimension_semantics<parallel>], iteration_bounds = array<i64: 1>, scalar_prefetch = 0 : i64, scratch_operands = 0 : i64, tpu.core_type = #tpu.core_type<tc>, window_params = [{transform_indices = @transform_0, window_bounds = array<i64: 1>}, {transform_indices = @transform_1, window_bounds = array<i64: 1>}, {transform_indices = @transform_2, window_bounds = array<i64: 8, 128>}, {pipeline_mode = #tpu.pipeline_mode<synchronous>, transform_indices = @transform_3, window_bounds = array<i64: 128, 128>}, {pipeline_mode = #tpu.pipeline_mode<synchronous>, transform_indices = @transform_4, window_bounds = array<i64: 128, 128>}, {pipeline_mode = #tpu.pipeline_mode<synchronous>, transform_indices = @transform_5, window_bounds = array<i64: 128, 16>}, {pipeline_mode = #tpu.pipeline_mode<synchronous>, transform_indices = @transform_6, window_bounds = array<i64: 1, 16>}, {transform_indices = @transform_7, window_bounds = array<i64: 8, 16>}]} {
    %c0 = arith.constant 0 : index
    %c0_0 = arith.constant 0 : index
    %0 = vector.load %arg3[%c0, %c0_0] : memref<8x128xf32, #tpu.memory_space<vmem>>, vector<8x128xf32>
    %c0_1 = arith.constant 0 : index
    %c0_2 = arith.constant 0 : index
    %1 = vector.load %arg4[%c0_1, %c0_2] : memref<128x128xf32, #tpu.memory_space<vmem>>, vector<128x128xf32>
    %cst = arith.constant dense<0.000000e+00> : vector<8x128xf32>
    %2 = tpu.matmul %0, %1, %cst {dimension_numbers = #tpu.dot_dimension_numbers<[1], [0], [0], [1], [0, 0, 1, 1], [], []>} : vector<8x128xf32>, vector<128x128xf32>, vector<8x128xf32> -> vector<8x128xf32>
    %c0_3 = arith.constant 0 : index
    %3 = memref.load %arg1[%c0_3] : memref<1xf32, #tpu.memory_space<smem>>
    %4 = vector.broadcast %3 : f32 to vector<8x128xf32>
    %5 = arith.addf %2, %4 : vector<8x128xf32>
    %cst_4 = arith.constant 0.000000e+00 : f32
    %6 = vector.broadcast %cst_4 : f32 to vector<8x128xf32>
    %7 = arith.maximumf %5, %6 : vector<8x128xf32>
    %c0_5 = arith.constant 0 : index
    %c0_6 = arith.constant 0 : index
    %8 = vector.load %arg5[%c0_5, %c0_6] : memref<128x128xf32, #tpu.memory_space<vmem>>, vector<128x128xf32>
    %cst_7 = arith.constant dense<0.000000e+00> : vector<8x128xf32>
    %9 = tpu.matmul %7, %8, %cst_7 {dimension_numbers = #tpu.dot_dimension_numbers<[1], [0], [0], [1], [0, 0, 1, 1], [], []>} : vector<8x128xf32>, vector<128x128xf32>, vector<8x128xf32> -> vector<8x128xf32>
    %c0_8 = arith.constant 0 : index
    %10 = memref.load %arg2[%c0_8] : memref<1xf32, #tpu.memory_space<smem>>
    %11 = vector.broadcast %10 : f32 to vector<8x128xf32>
    %12 = arith.addf %9, %11 : vector<8x128xf32>
    %cst_9 = arith.constant 0.000000e+00 : f32
    %13 = vector.broadcast %cst_9 : f32 to vector<8x128xf32>
    %14 = arith.maximumf %12, %13 : vector<8x128xf32>
    %c0_10 = arith.constant 0 : index
    %c0_11 = arith.constant 0 : index
    %15 = vector.load %arg6[%c0_10, %c0_11] : memref<128x16xf32, #tpu.memory_space<vmem>>, vector<128x16xf32>
    %cst_12 = arith.constant dense<0.000000e+00> : vector<8x16xf32>
    %16 = tpu.matmul %14, %15, %cst_12 {dimension_numbers = #tpu.dot_dimension_numbers<[1], [0], [0], [1], [0, 0, 1, 1], [], []>} : vector<8x128xf32>, vector<128x16xf32>, vector<8x16xf32> -> vector<8x16xf32>
    %c0_13 = arith.constant 0 : index
    %c0_14 = arith.constant 0 : index
    %17 = vector.load %arg7[%c0_13, %c0_14] : memref<1x16xf32, #tpu.memory_space<vmem>>, vector<1x16xf32>
    %18 = vector.broadcast %17 : vector<1x16xf32> to vector<8x16xf32>
    %19 = arith.addf %16, %18 : vector<8x16xf32>
    %c0_15 = arith.constant 0 : index
    %c0_16 = arith.constant 0 : index
    %20 = vector.load %arg8[%c0_15, %c0_16] : memref<8x16xf32, #tpu.memory_space<vmem>>, vector<8x16xf32>
    tpu.vector_store %arg8[%c0_15, %c0_16], %19 {strides = array<i32>} : memref<8x16xf32, #tpu.memory_space<vmem>>, vector<8x16xf32>,
    return
  }
  func.func @transform_0(%arg0: i32) -> i32 {
    %c0_i32 = arith.constant 0 : i32
    %c0_i32_0 = arith.constant 0 : i32
    return %c0_i32 : i32
  }
  func.func @transform_1(%arg0: i32) -> i32 {
    %c0_i32 = arith.constant 0 : i32
    %c0_i32_0 = arith.constant 0 : i32
    return %c0_i32 : i32
  }
  func.func @transform_2(%arg0: i32) -> (i32, i32) {
    %c0_i32 = arith.constant 0 : i32
    %c0_i32_0 = arith.constant 0 : i32
    return %arg0, %c0_i32 : i32, i32
  }
  func.func @transform_3(%arg0: i32) -> (i32, i32) {
    %c0_i32 = arith.constant 0 : i32
    %c0_i32_0 = arith.constant 0 : i32
    %c0_i32_1 = arith.constant 0 : i32
    return %c0_i32, %c0_i32_0 : i32, i32
  }
  func.func @transform_4(%arg0: i32) -> (i32, i32) {
    %c0_i32 = arith.constant 0 : i32
    %c0_i32_0 = arith.constant 0 : i32
    %c0_i32_1 = arith.constant 0 : i32
    return %c0_i32, %c0_i32_0 : i32, i32
  }
  func.func @transform_5(%arg0: i32) -> (i32, i32) {
    %c0_i32 = arith.constant 0 : i32
    %c0_i32_0 = arith.constant 0 : i32
    %c0_i32_1 = arith.constant 0 : i32
    return %c0_i32, %c0_i32_0 : i32, i32
  }
  func.func @transform_6(%arg0: i32) -> (i32, i32) {
    %c0_i32 = arith.constant 0 : i32
    %c0_i32_0 = arith.constant 0 : i32
    %c0_i32_1 = arith.constant 0 : i32
    return %c0_i32, %c0_i32_0 : i32, i32
  }
  func.func @transform_7(%arg0: i32) -> (i32, i32) {
    %c0_i32 = arith.constant 0 : i32
    %c0_i32_0 = arith.constant 0 : i32
    return %arg0, %c0_i32 : i32, i32
  }
}

</mosaic_0001>

<llo_original>
// kernel: tpu_custom_call.1
$region0: #{tpu_custom_call.1}
  #allocation0 [shape = 'u32[]', space=smem, size = 0x4, offset = 0x4, fixed_abs, tag = 'smem constant byte address 0x4 - core index']
  #allocation1 [shape = 'u32[144,128]{1,0:T(1,128)}', space=vmem, size = 0x12000, scoped, tag = 'internal scratch']
  #allocation2 [shape = 'f32[1]{0:T(128)S(6)}', space=smem, size = 0x200, scoped, tag = 'scoped memory for tpu_custom_call.1']
  #allocation3 [shape = 'f32[1]{0:T(128)S(6)}', space=smem, size = 0x200, scoped, tag = 'scoped memory for tpu_custom_call.1']
  %s0 = inlined_call_operand.<no memory space> [shape: f32[1], index: 0, kind: input, shape index: {}]
  %s1 = inlined_call_operand.<no memory space> [shape: f32[1], index: 1, kind: input, shape index: {}]
  %s2 = inlined_call_operand.vmem [shape: f32[8,128], index: 2, kind: input, shape index: {}]
  %s3 = inlined_call_operand.vmem [shape: f32[128,128], index: 3, kind: input, shape index: {}]
  %s4 = inlined_call_operand.hbm [shape: f32[128,128], index: 4, kind: input, shape index: {}]
  %s5 = inlined_call_operand.vmem [shape: f32[128,16], index: 5, kind: input, shape index: {}]
  %s6 = inlined_call_operand.vmem [shape: f32[1,16], index: 6, kind: input, shape index: {}]
  %s7 = inlined_call_operand.hbm [shape: f32[8,16], index: 7, kind: output, shape index: {}]
  %s8 = sld [smem:[#allocation0]]
  $region42: #{tpu_custom_call.1} parent=0
    _
  %s10 = ssub.s32 1, %s8
  %s11 = scalar_select 0, %s10, %s8
  %12 = sst [smem:[#allocation2]] %s0
  %13 = sst [smem:[#allocation3]] %s1
  $region1: #{tpu_custom_call.1} parent=0
    #allocation4 [shape = 'u8[65536]{0}', space=vmem, size = 0x10000, scoped, tag = 'input window, operand 4, single buffered']
    #allocation5 [shape = 's32[1]{0}', space=sflag, size = 0x4, scoped, tag = 'scoped memory for tpu_custom_call.1']
    #allocation6 [shape = 's32[1]{0}', space=sflag, size = 0x4, scoped, tag = 'scoped memory for tpu_custom_call.1']
    #allocation7 [shape = 'u8[4096]{0}', space=vmem, size = 0x1000, scoped, tag = 'output window, operand 0, single buffered']
    %14 = vsyncpa [#allocation5], 0
    %15 = vsyncpa [#allocation6], 0
    // Predicated region
    $region2: #{tpu_custom_call.1} parent=1 // pred_check
      _
    $region3: #{tpu_custom_call.1} parent=1 // pred_check_branch
      %17 = sbr.rel (0) target = $region5
    $region4: #{tpu_custom_call.1} parent=1 // pred_region
      _
    $region5: #{tpu_custom_call.1} parent=1 // pred_fallthru
      _
    // Predicated region
    $region6: #{tpu_custom_call.1} parent=1 // pred_check
      _
    $region7: #{tpu_custom_call.1} parent=1 // pred_check_branch
      %19 = sbr.rel (0) target = $region9
    $region8: #{tpu_custom_call.1} parent=1 // pred_region
      _
    $region9: #{tpu_custom_call.1} parent=1 // pred_fallthru
      _
    // Predicated region
    $region10: #{tpu_custom_call.1} parent=1 // pred_check
      _
    $region11: #{tpu_custom_call.1} parent=1 // pred_check_branch
      %21 = sbr.rel (0) target = $region13
    $region12: #{tpu_custom_call.1} parent=1 // pred_region
      _
    $region13: #{tpu_custom_call.1} parent=1 // pred_fallthru
      _
    // Predicated region
    $region14: #{tpu_custom_call.1} parent=1 // pred_check
      _
    $region15: #{tpu_custom_call.1} parent=1 // pred_check_branch
      %23 = sbr.rel (0) target = $region17
    $region16: #{tpu_custom_call.1} parent=1 // pred_region
      _
    $region17: #{tpu_custom_call.1} parent=1 // pred_fallthru
      _
    // Predicated region
    $region18: #{tpu_custom_call.1} parent=1 // pred_check
      _
    $region19: #{tpu_custom_call.1} parent=1 // pred_check_branch
      %25 = sbr.rel (0) target = $region21
    $region20: #{tpu_custom_call.1} parent=1 // pred_region
      %s27 = ssub.s32 2048, 2048
      %28 = vsyncadd [#allocation5], %s27
      %s29 = sshll.u32 [#allocation4], 4
      %s30 = int_to_ptr.vmem [resolvable:$true] %s29
      %35 = dma.hbm_to_vmem [thread:$0]  %s4, 2048, %s30, [#allocation5], 128, 128, 8
    $region21: #{tpu_custom_call.1} parent=1 // pred_fallthru
      _
    // Predicated region
    $region22: #{tpu_custom_call.1} parent=1 // pred_check
      _
    $region23: #{tpu_custom_call.1} parent=1 // pred_check_branch
      %37 = sbr.rel (0) target = $region25
    $region24: #{tpu_custom_call.1} parent=1 // pred_region
      _
    $region25: #{tpu_custom_call.1} parent=1 // pred_fallthru
      _
    // Predicated region
    $region26: #{tpu_custom_call.1} parent=1 // pred_check
      _
    $region27: #{tpu_custom_call.1} parent=1 // pred_check_branch
      %39 = sbr.rel (0) target = $region29
    $region28: #{tpu_custom_call.1} parent=1 // pred_region
      _
    $region29: #{tpu_custom_call.1} parent=1 // pred_fallthru
      _
    // Predicated region
    $region30: #{tpu_custom_call.1} parent=1 // pred_check
      _
    $region31: #{tpu_custom_call.1} parent=1 // pred_check_branch
      %41 = sbr.rel (0) target = $region33
    $region32: #{tpu_custom_call.1} parent=1 // pred_region
      %42 = dma.done [#allocation5], 2048
    $region33: #{tpu_custom_call.1} parent=1 // pred_fallthru
      _
    %v43 = vld [vmem:[%s2] sm:$0xff]
    %v44 = vld [vmem:[%s3] sm:$0xff]
    %v45 = vld [vmem:[%s3 + $0x8] sm:$0xff]
    %v46 = vld [vmem:[%s3 + $0x10] sm:$0xff]
    %v47 = vld [vmem:[%s3 + $0x18] sm:$0xff]
    %v48 = vld [vmem:[%s3 + $0x20] sm:$0xff]
    %v49 = vld [vmem:[%s3 + $0x28] sm:$0xff]
    %v50 = vld [vmem:[%s3 + $0x30] sm:$0xff]
    %v51 = vld [vmem:[%s3 + $0x38] sm:$0xff]
    %v52 = vld [vmem:[%s3 + $0x40] sm:$0xff]
    %v53 = vld [vmem:[%s3 + $0x48] sm:$0xff]
    %v54 = vld [vmem:[%s3 + $0x50] sm:$0xff]
    %v55 = vld [vmem:[%s3 + $0x58] sm:$0xff]
    %v56 = vld [vmem:[%s3 + $0x60] sm:$0xff]
    %v57 = vld [vmem:[%s3 + $0x68] sm:$0xff]
    %v58 = vld [vmem:[%s3 + $0x70] sm:$0xff]
    %v59 = vld [vmem:[%s3 + $0x78] sm:$0xff]
    %s60 = sld [smem:[#allocation2]]
    %v61 = vstv %s60
    %62 = vmatprep.subr.mxu0 0.0
    %63 = vmatpush1.msra.mxu0 %v59
    %64 = vmatprep.subr.mxu0 0.0
    %65 = vmatpush1.msra.mxu0 %v58
    %66 = vmatprep.subr.mxu0 0.0
    %67 = vmatpush1.msra.mxu0 %v57
    %68 = vmatprep.subr.mxu0 0.0
    %69 = vmatpush1.msra.mxu0 %v56
    %70 = vmatprep.subr.mxu0 0.0
    %71 = vmatpush1.msra.mxu0 %v55
    %72 = vmatprep.subr.mxu0 0.0
    %73 = vmatpush1.msra.mxu0 %v54
    %74 = vmatprep.subr.mxu0 0.0
    %75 = vmatpush1.msra.mxu0 %v53
    %76 = vmatprep.subr.mxu0 0.0
    %77 = vmatpush1.msra.mxu0 %v52
    %78 = vmatprep.subr.mxu0 0.0
    %79 = vmatpush1.msra.mxu0 %v51
    %80 = vmatprep.subr.mxu0 0.0
    %81 = vmatpush1.msra.mxu0 %v50
    %82 = vmatprep.subr.mxu0 0.0
    %83 = vmatpush1.msra.mxu0 %v49
    %84 = vmatprep.subr.mxu0 0.0
    %85 = vmatpush1.msra.mxu0 %v48
    %86 = vmatprep.subr.mxu0 0.0
    %87 = vmatpush1.msra.mxu0 %v47
    %88 = vmatprep.subr.mxu0 0.0
    %89 = vmatpush1.msra.mxu0 %v46
    %90 = vmatprep.subr.mxu0 0.0
    %91 = vmatpush1.msra.mxu0 %v45
    %92 = vmatprep.subr.mxu0 0.0
    %93 = vmatpush1.msra.mxu0 %v44
    %94 = vmatprep.subr.mxu0 0.0
    %95 = vmatpush2.msra.mxu0 0.0
    %96 = vmatprep.subr.mxu0 0.0
    %97 = vmatpush2.msra.mxu0 0.0
    %98 = vmatprep.subr.mxu0 0.0
    %99 = vmatpush2.msra.mxu0 0.0
    %100 = vmatprep.subr.mxu0 0.0
    %101 = vmatpush2.msra.mxu0 0.0
    %102 = vmatprep.subr.mxu0 0.0
    %103 = vmatpush2.msra.mxu0 0.0
    %104 = vmatprep.subr.mxu0 0.0
    %105 = vmatpush2.msra.mxu0 0.0
    %106 = vmatprep.subr.mxu0 0.0
    %107 = vmatpush2.msra.mxu0 0.0
    %108 = vmatprep.subr.mxu0 0.0
    %109 = vmatpush2.msra.mxu0 0.0
    %110 = vmatprep.subr.mxu0 0.0
    %111 = vmatpush2.msra.mxu0 0.0
    %112 = vmatprep.subr.mxu0 0.0
    %113 = vmatpush2.msra.mxu0 0.0
    %114 = vmatprep.subr.mxu0 0.0
    %115 = vmatpush2.msra.mxu0 0.0
    %116 = vmatprep.subr.mxu0 0.0
    %117 = vmatpush2.msra.mxu0 0.0
    %118 = vmatprep.subr.mxu0 0.0
    %119 = vmatpush2.msra.mxu0 0.0
    %120 = vmatprep.subr.mxu0 0.0
    %121 = vmatpush2.msra.mxu0 0.0
    %122 = vmatprep.subr.mxu0 0.0
    %123 = vmatpush2.msra.mxu0 0.0
    %124 = vmatprep.subr.mxu0 0.0
    %125 = vmatpush2.msra.mxu0 0.0
    %126 = vmatprep.mubr.f32.mxu0 0.0
    %127 = vmatmul.mubr.f32.gmra.mxu0 %v43
    %v128 = vpop.f32.mrf.mxu0
    %v129 = vadd.f32 %v61, %v128
    %v130 = vpop.f32.mrf.mxu0
    %131 = vdwg.mxu0
    %v132 = vmax.f32 %v129, 0.0
    %v133 = vld [vmem:[#allocation4] sm:$0xff]
    %v134 = vld [vmem:[#allocation4 + $0x8] sm:$0xff]
    %v135 = vld [vmem:[#allocation4 + $0x10] sm:$0xff]
    %v136 = vld [vmem:[#allocation4 + $0x18] sm:$0xff]
    %v137 = vld [vmem:[#allocation4 + $0x20] sm:$0xff]
    %v138 = vld [vmem:[#allocation4 + $0x28] sm:$0xff]
    %v139 = vld [vmem:[#allocation4 + $0x30] sm:$0xff]
    %v140 = vld [vmem:[#allocation4 + $0x38] sm:$0xff]
    %v141 = vld [vmem:[#allocation4 + $0x40] sm:$0xff]
    %v142 = vld [vmem:[#allocation4 + $0x48] sm:$0xff]
    %v143 = vld [vmem:[#allocation4 + $0x50] sm:$0xff]
    %v144 = vld [vmem:[#allocation4 + $0x58] sm:$0xff]
    %v145 = vld [vmem:[#allocation4 + $0x60] sm:$0xff]
    %v146 = vld [vmem:[#allocation4 + $0x68] sm:$0xff]
    %v147 = vld [vmem:[#allocation4 + $0x70] sm:$0xff]
    %v148 = vld [vmem:[#allocation4 + $0x78] sm:$0xff]
    %s149 = sld [smem:[#allocation3]]
    %v150 = vstv %s149
    %151 = vmatprep.subr.mxu0 0.0
    %152 = vmatpush1.msra.mxu0 %v148
    %153 = vmatprep.subr.mxu0 0.0
    %154 = vmatpush1.msra.mxu0 %v147
    %155 = vmatprep.subr.mxu0 0.0
    %156 = vmatpush1.msra.mxu0 %v146
    %157 = vmatprep.subr.mxu0 0.0
    %158 = vmatpush1.msra.mxu0 %v145
    %159 = vmatprep.subr.mxu0 0.0
    %160 = vmatpush1.msra.mxu0 %v144
    %161 = vmatprep.subr.mxu0 0.0
    %162 = vmatpush1.msra.mxu0 %v143
    %163 = vmatprep.subr.mxu0 0.0
    %164 = vmatpush1.msra.mxu0 %v142
    %165 = vmatprep.subr.mxu0 0.0
    %166 = vmatpush1.msra.mxu0 %v141
    %167 = vmatprep.subr.mxu0 0.0
    %168 = vmatpush1.msra.mxu0 %v140
    %169 = vmatprep.subr.mxu0 0.0
    %170 = vmatpush1.msra.mxu0 %v139
    %171 = vmatprep.subr.mxu0 0.0
    %172 = vmatpush1.msra.mxu0 %v138
    %173 = vmatprep.subr.mxu0 0.0
    %174 = vmatpush1.msra.mxu0 %v137
    %175 = vmatprep.subr.mxu0 0.0
    %176 = vmatpush1.msra.mxu0 %v136
    %177 = vmatprep.subr.mxu0 0.0
    %178 = vmatpush1.msra.mxu0 %v135
    %179 = vmatprep.subr.mxu0 0.0
    %180 = vmatpush1.msra.mxu0 %v134
    %181 = vmatprep.subr.mxu0 0.0
    %182 = vmatpush1.msra.mxu0 %v133
    %183 = vmatprep.subr.mxu0 0.0
    %184 = vmatpush2.msra.mxu0 0.0
    %185 = vmatprep.subr.mxu0 0.0
    %186 = vmatpush2.msra.mxu0 0.0
    %187 = vmatprep.subr.mxu0 0.0
    %188 = vmatpush2.msra.mxu0 0.0
    %189 = vmatprep.subr.mxu0 0.0
    %190 = vmatpush2.msra.mxu0 0.0
    %191 = vmatprep.subr.mxu0 0.0
    %192 = vmatpush2.msra.mxu0 0.0
    %193 = vmatprep.subr.mxu0 0.0
    %194 = vmatpush2.msra.mxu0 0.0
    %195 = vmatprep.subr.mxu0 0.0
    %196 = vmatpush2.msra.mxu0 0.0
    %197 = vmatprep.subr.mxu0 0.0
    %198 = vmatpush2.msra.mxu0 0.0
    %199 = vmatprep.subr.mxu0 0.0
    %200 = vmatpush2.msra.mxu0 0.0
    %201 = vmatprep.subr.mxu0 0.0
    %202 = vmatpush2.msra.mxu0 0.0
    %203 = vmatprep.subr.mxu0 0.0
    %204 = vmatpush2.msra.mxu0 0.0
    %205 = vmatprep.subr.mxu0 0.0
    %206 = vmatpush2.msra.mxu0 0.0
    %207 = vmatprep.subr.mxu0 0.0
    %208 = vmatpush2.msra.mxu0 0.0
    %209 = vmatprep.subr.mxu0 0.0
    %210 = vmatpush2.msra.mxu0 0.0
    %211 = vmatprep.subr.mxu0 0.0
    %212 = vmatpush2.msra.mxu0 0.0
    %213 = vmatprep.subr.mxu0 0.0
    %214 = vmatpush2.msra.mxu0 0.0
    %215 = vmatprep.mubr.f32.mxu0 0.0
    %216 = vmatmul.mubr.f32.gmra.mxu0 %v132
    %v217 = vpop.f32.mrf.mxu0
    %v218 = vadd.f32 %v150, %v217
    %v219 = vpop.f32.mrf.mxu0
    %220 = vdwg.mxu0
    %v221 = vmax.f32 %v218, 0.0
    %v222 = vld [vmem:[%s5] sm:$0xff]
    %v223 = vld [vmem:[%s5 + $0x8] sm:$0xff]
    %v224 = vld [vmem:[%s5 + $0x10] sm:$0xff]
    %v225 = vld [vmem:[%s5 + $0x18] sm:$0xff]
    %v226 = vld [vmem:[%s5 + $0x20] sm:$0xff]
    %v227 = vld [vmem:[%s5 + $0x28] sm:$0xff]
    %v228 = vld [vmem:[%s5 + $0x30] sm:$0xff]
    %v229 = vld [vmem:[%s5 + $0x38] sm:$0xff]
    %v230 = vld [vmem:[%s5 + $0x40] sm:$0xff]
    %v231 = vld [vmem:[%s5 + $0x48] sm:$0xff]
    %v232 = vld [vmem:[%s5 + $0x50] sm:$0xff]
    %v233 = vld [vmem:[%s5 + $0x58] sm:$0xff]
    %v234 = vld [vmem:[%s5 + $0x60] sm:$0xff]
    %v235 = vld [vmem:[%s5 + $0x68] sm:$0xff]
    %v236 = vld [vmem:[%s5 + $0x70] sm:$0xff]
    %v237 = vld [vmem:[%s5 + $0x78] sm:$0xff]
    %v238 = vld [vmem:[%s6] sm:$0x1]
    %v240 = vlaneseq
    %v241 = vshrl.u32 %v240, 7
    %v242 = vsub.s32 0, %v241
    %v243 = vrot.slane %v238, %v242
    %245 = vmatprep.subr.mxu0 0.0
    %246 = vmatpush1.msra.mxu0 %v237
    %247 = vmatprep.subr.mxu0 0.0
    %248 = vmatpush1.msra.mxu0 %v236
    %249 = vmatprep.subr.mxu0 0.0
    %250 = vmatpush1.msra.mxu0 %v235
    %251 = vmatprep.subr.mxu0 0.0
    %252 = vmatpush1.msra.mxu0 %v234
    %253 = vmatprep.subr.mxu0 0.0
    %254 = vmatpush1.msra.mxu0 %v233
    %255 = vmatprep.subr.mxu0 0.0
    %256 = vmatpush1.msra.mxu0 %v232
    %257 = vmatprep.subr.mxu0 0.0
    %258 = vmatpush1.msra.mxu0 %v231
    %259 = vmatprep.subr.mxu0 0.0
    %260 = vmatpush1.msra.mxu0 %v230
    %261 = vmatprep.subr.mxu0 0.0
    %262 = vmatpush1.msra.mxu0 %v229
    %263 = vmatprep.subr.mxu0 0.0
    %264 = vmatpush1.msra.mxu0 %v228
    %265 = vmatprep.subr.mxu0 0.0
    %266 = vmatpush1.msra.mxu0 %v227
    %267 = vmatprep.subr.mxu0 0.0
    %268 = vmatpush1.msra.mxu0 %v226
    %269 = vmatprep.subr.mxu0 0.0
    %270 = vmatpush1.msra.mxu0 %v225
    %271 = vmatprep.subr.mxu0 0.0
    %272 = vmatpush1.msra.mxu0 %v224
    %273 = vmatprep.subr.mxu0 0.0
    %274 = vmatpush1.msra.mxu0 %v223
    %275 = vmatprep.subr.mxu0 0.0
    %276 = vmatpush1.msra.mxu0 %v222
    %277 = vmatprep.subr.mxu0 0.0
    %278 = vmatpush2.msra.mxu0 0.0
    %279 = vmatprep.subr.mxu0 0.0
    %280 = vmatpush2.msra.mxu0 0.0
    %281 = vmatprep.subr.mxu0 0.0
    %282 = vmatpush2.msra.mxu0 0.0
    %283 = vmatprep.subr.mxu0 0.0
    %284 = vmatpush2.msra.mxu0 0.0
    %285 = vmatprep.subr.mxu0 0.0
    %286 = vmatpush2.msra.mxu0 0.0
    %287 = vmatprep.subr.mxu0 0.0
    %288 = vmatpush2.msra.mxu0 0.0
    %289 = vmatprep.subr.mxu0 0.0
    %290 = vmatpush2.msra.mxu0 0.0
    %291 = vmatprep.subr.mxu0 0.0
    %292 = vmatpush2.msra.mxu0 0.0
    %293 = vmatprep.subr.mxu0 0.0
    %294 = vmatpush2.msra.mxu0 0.0
    %295 = vmatprep.subr.mxu0 0.0
    %296 = vmatpush2.msra.mxu0 0.0
    %297 = vmatprep.subr.mxu0 0.0
    %298 = vmatpush2.msra.mxu0 0.0
    %299 = vmatprep.subr.mxu0 0.0
    %300 = vmatpush2.msra.mxu0 0.0
    %301 = vmatprep.subr.mxu0 0.0
    %302 = vmatpush2.msra.mxu0 0.0
    %303 = vmatprep.subr.mxu0 0.0
    %304 = vmatpush2.msra.mxu0 0.0
    %305 = vmatprep.subr.mxu0 0.0
    %306 = vmatpush2.msra.mxu0 0.0
    %307 = vmatprep.subr.mxu0 0.0
    %308 = vmatpush2.msra.mxu0 0.0
    %309 = vmatprep.mubr.f32.mxu0 0.0
    %310 = vmatmul.mubr.f32.gmra.mxu0 %v221
    %v311 = vpop.f32.mrf.mxu0
    %v312 = vadd.f32 %v243, %v311
    %v313 = vpop.f32.mrf.mxu0
    %314 = vdwg.mxu0
    %vm315 = vcmask 130048
    %316 = vst.msk [vmem:[#allocation7] sm:$0xff] %vm315, %v312
    // Predicated region
    $region34: #{tpu_custom_call.1} parent=1 // pred_check
      _
    $region35: #{tpu_custom_call.1} parent=1 // pred_check_branch
      %318 = sbr.rel (0) target = $region37
    $region36: #{tpu_custom_call.1} parent=1 // pred_region
      %s320 = ssub.s32 128, 128
      %321 = vsyncadd [#allocation6], %s320
      %s323 = sshll.u32 [#allocation7], 4
      %s324 = int_to_ptr.vmem [resolvable:$true] %s323
      %326 = dma.vmem_to_hbm [thread:$0]  %s324, 128, %s7, [#allocation6]
    $region37: #{tpu_custom_call.1} parent=1 // pred_fallthru
      _
    // Predicated region
    $region38: #{tpu_custom_call.1} parent=1 // pred_check
      _
    $region39: #{tpu_custom_call.1} parent=1 // pred_check_branch
      %328 = sbr.rel (0) target = $region41
    $region40: #{tpu_custom_call.1} parent=1 // pred_region
      %329 = dma.done [#allocation6], 128
    $region41: #{tpu_custom_call.1} parent=1 // pred_fallthru
      _
    %330 = vsyncpa [#allocation5], 1
    %331 = vsyncpa [#allocation6], 1

</llo_original>
